<compile_context>
chip_gen: v7x
topology: tpu7x:2x2x1
jax: 0.10.0
libtpu: 0.0.40
codegen_flags: <defaults>
</compile_context>

<pallas_src>
import jax
import jax.numpy as jnp
from jax.experimental import pallas as pl
from jax.experimental.pallas import tpu as pltpu


HID1, HID2, HID3 = 4, 4, 2          # GCNConv output widths from the PyTorch module
N_PAD = 128                         # padded node / contraction dimension
OUT_LANES = 128                     # lane-dense slab width

# Row offsets inside the single bf16 data+weight slab.  All offsets are multiples of 16
# (the bf16 sublane-pack factor) and every block starts at lane 0, so each static slice
# in the kernel is an aligned, relayout-free view.
A_OFF = 0                            # A_hat padded to [128, 128]
X_OFF = A_OFF + N_PAD                # X     padded to [128, 128]
W1_OFF = X_OFF + N_PAD               # w1    padded to [128, HID1]
W2_OFF = W1_OFF + N_PAD              # w2    [HID1, HID2]
W3_OFF = W2_OFF + 16                 # w3    [HID2, HID3]   (own block, lane 0)
WC_OFF = W3_OFF + 16                 # wc    [HID3, C]
SLAB_ROWS = WC_OFF + 16              # 432 rows total (bf16)

# Rows inside the small f32 bias slab.
B1_ROW, B2_ROW, B3_ROW, BC_ROW = 0, 1, 2, 3
BIAS_ROWS = 8


# ----------------------------- Pallas kernel ----------------------------------------


def make_gcn_kernel(num_classes):
    C = num_classes

    def gcn_kernel(d_ref, b_ref, out_ref):
        # Static, lane-0-aligned views of the packed bf16 data+weight slab.
        a = d_ref[A_OFF:A_OFF + N_PAD, :]                    # [128, 128] bf16 A_hat
        x = d_ref[X_OFF:X_OFF + N_PAD, :]                    # [128, 128] bf16 features
        w1 = d_ref[W1_OFF:W1_OFF + N_PAD, 0:HID1]            # [128, 4]   bf16
        w2 = d_ref[W2_OFF:W2_OFF + HID1, 0:HID2]             # [4, 4]     bf16
        w3 = d_ref[W3_OFF:W3_OFF + HID2, 0:HID3]             # [4, 2]     bf16
        wc = d_ref[WC_OFF:WC_OFF + HID3, 0:C]                # [2, C]     bf16

        # Biases stay f32 (bias add + tanh run in f32 on VPU/EUP; required on v5e).
        b1 = b_ref[B1_ROW:B1_ROW + 1, 0:HID1]                # [1, 4] f32
        b2 = b_ref[B2_ROW:B2_ROW + 1, 0:HID2]                # [1, 4] f32
        b3 = b_ref[B3_ROW:B3_ROW + 1, 0:HID3]                # [1, 2] f32
        bc = b_ref[BC_ROW:BC_ROW + 1, 0:C]                   # [1, C] f32

        def gcn_layer(h_bf16, w_bf16, b_f32):
            # X @ W first (cheap), then A_hat @ (XW): both bf16 MXU dots with f32
            # accumulation; padded rows/lanes are exactly zero so results are exact.
            xw = jnp.dot(h_bf16, w_bf16, preferred_element_type=jnp.float32)
            ax = jnp.dot(a, xw.astype(jnp.bfloat16),
                         preferred_element_type=jnp.float32)
            return jnp.tanh(ax + b_f32)

        h1 = gcn_layer(x, w1, b1)                             # [128, 4] f32
        h2 = gcn_layer(h1.astype(jnp.bfloat16), w2, b2)       # [128, 4] f32
        h3 = gcn_layer(h2.astype(jnp.bfloat16), w3, b3)       # [128, 2] f32
        logits = jnp.dot(h3.astype(jnp.bfloat16), wc,
                         preferred_element_type=jnp.float32) + bc   # [128, C] f32

        # Assemble the full lane-dense output slab in registers; ONE unmasked store.
        pad = jnp.zeros((N_PAD, OUT_LANES - C - HID3), jnp.float32)
        out_ref[...] = jnp.concatenate([logits, h3, pad], axis=1)

    return gcn_kernel


# ----------------------------- wrapper ----------------------------------------------


def pack_inputs(a_hat, x, params):
    """Pack A_hat, X and all weights into one bf16 slab; biases into a tiny f32 slab."""
    n, f = x.shape
    c = params["wc"].shape[1]

    slab = jnp.zeros((SLAB_ROWS, OUT_LANES), jnp.bfloat16)
    slab = slab.at[A_OFF:A_OFF + n, 0:n].set(a_hat.astype(jnp.bfloat16))
    slab = slab.at[X_OFF:X_OFF + n, 0:f].set(x.astype(jnp.bfloat16))
    slab = slab.at[W1_OFF:W1_OFF + f, 0:HID1].set(params["w1"].astype(jnp.bfloat16))
    slab = slab.at[W2_OFF:W2_OFF + HID1, 0:HID2].set(params["w2"].astype(jnp.bfloat16))
    slab = slab.at[W3_OFF:W3_OFF + HID2, 0:HID3].set(params["w3"].astype(jnp.bfloat16))
    slab = slab.at[WC_OFF:WC_OFF + HID3, 0:c].set(params["wc"].astype(jnp.bfloat16))

    biases = jnp.zeros((BIAS_ROWS, OUT_LANES), jnp.float32)
    biases = biases.at[B1_ROW, 0:HID1].set(params["b1"][0])
    biases = biases.at[B2_ROW, 0:HID2].set(params["b2"][0])
    biases = biases.at[B3_ROW, 0:HID3].set(params["b3"][0])
    biases = biases.at[BC_ROW, 0:c].set(params["bc"][0])
    return slab, biases


def gcn_forward(a_hat, x, params):
    n, f = x.shape
    c = params["wc"].shape[1]
    assert n <= N_PAD and f <= N_PAD and c + HID3 <= OUT_LANES

    d_slab, b_slab = pack_inputs(a_hat, x, params)

    vmem = pl.BlockSpec(memory_space=pltpu.MemorySpace.VMEM)   # whole array in VMEM

    flops = 2 * N_PAD * (N_PAD * HID1 + N_PAD * HID1           # layer 1
                         + HID1 * HID2 + N_PAD * HID2          # layer 2
                         + HID2 * HID3 + N_PAD * HID3          # layer 3
                         + HID3 * c)                           # classifier
    bytes_accessed = (d_slab.size * 2 + b_slab.size * 4
                      + N_PAD * OUT_LANES * 4)

    out_slab = pl.pallas_call(
        make_gcn_kernel(c),
        out_shape=jax.ShapeDtypeStruct((N_PAD, OUT_LANES), jnp.float32),
        in_specs=[vmem, vmem],
        out_specs=vmem,
        cost_estimate=pl.CostEstimate(
            flops=flops,
            transcendentals=N_PAD * (HID1 + HID2 + HID3),
            bytes_accessed=bytes_accessed),
    )(d_slab, b_slab)

    logits = out_slab[:n, 0:c]
    h = out_slab[:n, c:c + HID3]
    return logits, h


# ------------- glue: graph preprocessing & deterministic parameter init -------------
# TODO(synk): the edge_index -> dense normalized adjacency build (a scatter) has no
# clean tiny-Pallas equivalent; it is done once in plain JAX as preprocessing.


def build_normalized_adjacency(edge_index, num_nodes):
    """Dense A_hat = D^-1/2 (A + I) D^-1/2 from a [2, E] edge_index."""
    src, dst = edge_index[0], edge_index[1]
    a = jnp.zeros((num_nodes, num_nodes), jnp.float32)
    a = a.at[src, dst].set(1.0)
    a = jnp.maximum(a, a.T)                            # undirected
    a = a * (1.0 - jnp.eye(num_nodes, dtype=jnp.float32))
    a = a + jnp.eye(num_nodes, dtype=jnp.float32)      # add self loops
    deg = jnp.sum(a, axis=1)
    d_inv_sqrt = jnp.where(deg > 0, 1.0 / jnp.sqrt(deg), 0.0)
    return (d_inv_sqrt[:, None] * a) * d_inv_sqrt[None, :]


def glorot(key, fan_in, fan_out):
    lim = jnp.sqrt(6.0 / (fan_in + fan_out))
    return jax.random.uniform(key, (fan_in, fan_out), jnp.float32, -lim, lim)


def init_params(key, num_features, num_classes):
    k = jax.random.split(key, 6)
    lim_c = 1.0 / jnp.sqrt(2.0)
    return {
        # GCNConv weights: [in, out], Glorot init; biases zero (PyG default)
        "w1": glorot(k[0], num_features, HID1), "b1": jnp.zeros((1, HID1), jnp.float32),
        "w2": glorot(k[1], HID1, HID2),         "b2": jnp.zeros((1, HID2), jnp.float32),
        "w3": glorot(k[2], HID2, HID3),         "b3": jnp.zeros((1, HID3), jnp.float32),
        # Linear(2, num_classes): PyTorch default uniform(-1/sqrt(in), 1/sqrt(in))
        "wc": jax.random.uniform(k[3], (HID3, num_classes), jnp.float32, -lim_c, lim_c),
        "bc": jax.random.uniform(k[4], (1, num_classes), jnp.float32, -lim_c, lim_c),
    }


def gcn_reference_f32(a_hat, x, p):
    h = jnp.tanh(a_hat @ (x @ p["w1"]) + p["b1"])
    h = jnp.tanh(a_hat @ (h @ p["w2"]) + p["b2"])
    h = jnp.tanh(a_hat @ (h @ p["w3"]) + p["b3"])
    return h @ p["wc"] + p["bc"], h


def gcn_reference_mixed(a_hat, x, p):
    """Same mixed-precision recipe as the kernel (bf16 MXU operands, f32 accumulate)."""
    a = a_hat.astype(jnp.bfloat16)

    def layer(h, w, b):
        xw = jnp.dot(h.astype(jnp.bfloat16), w.astype(jnp.bfloat16),
                     preferred_element_type=jnp.float32)
        ax = jnp.dot(a, xw.astype(jnp.bfloat16), preferred_element_type=jnp.float32)
        return jnp.tanh(ax + b)

    h = layer(x, p["w1"], p["b1"])
    h = layer(h, p["w2"], p["b2"])
    h = layer(h, p["w3"], p["b3"])
    logits = jnp.dot(h.astype(jnp.bfloat16), p["wc"].astype(jnp.bfloat16),
                     preferred_element_type=jnp.float32) + p["bc"]
    return logits, h


if __name__ == "__main__":
    # KarateClub-like sizes: 34 nodes, 34 one-hot features, 4 classes.
    N, NUM_FEATURES, NUM_CLASSES, NUM_EDGES = 34, 34, 4, 78

    key = jax.random.PRNGKey(0)
    k_src, k_dst, k_param = jax.random.split(key, 3)

    # Deterministic synthetic edge_index [2, 2*E] (undirected, symmetrized).
    src = jax.random.randint(k_src, (NUM_EDGES,), 0, N)
    dst = jax.random.randint(k_dst, (NUM_EDGES,), 0, N)
    edge_index = jnp.stack([jnp.concatenate([src, dst]),
                            jnp.concatenate([dst, src])], axis=0).astype(jnp.int32)

    # Node features: one-hot identity, as in KarateClub.
    x = jnp.eye(N, NUM_FEATURES, dtype=jnp.float32)

    a_hat = build_normalized_adjacency(edge_index, N)
    params = init_params(k_param, NUM_FEATURES, NUM_CLASSES)

    out, h = gcn_forward(a_hat, x, params)
    out = jax.block_until_ready(out)
    h = jax.block_until_ready(h)

    out_m, h_m = gcn_reference_mixed(a_hat, x, params)   # same precision recipe
    out_f, h_f = gcn_reference_f32(a_hat, x, params)     # pure-f32 sanity check

    assert out.shape == (N, NUM_CLASSES) and h.shape == (N, HID3)
    assert jnp.allclose(out, out_m, atol=2e-3, rtol=2e-3)
    assert jnp.allclose(h, h_m, atol=2e-3, rtol=2e-3)
    assert jnp.allclose(out, out_f, atol=5e-2)
    assert jnp.allclose(h, h_f, atol=5e-2)

    print("KERNEL_OK")
</pallas_src>

<mosaic_0001>
module attributes {stable_mosaic.version = 11 : i64} {
  func.func @gcn_kernel(%arg0: memref<432x128xbf16, #tpu.memory_space<vmem>>, %arg1: memref<8x128xf32, #tpu.memory_space<vmem>>, %arg2: memref<128x128xf32, #tpu.memory_space<vmem>>) attributes {dimension_semantics = [], scalar_prefetch = 0 : i64, scratch_operands = 0 : i64, tpu.core_type = #tpu.core_type<tc>} {
    %c0 = arith.constant 0 : index
    %c0_0 = arith.constant 0 : index
    %0 = vector.load %arg0[%c0, %c0_0] : memref<432x128xbf16, #tpu.memory_space<vmem>>, vector<128x128xbf16>
    %c128 = arith.constant 128 : index
    %c0_1 = arith.constant 0 : index
    %1 = vector.load %arg0[%c128, %c0_1] : memref<432x128xbf16, #tpu.memory_space<vmem>>, vector<128x128xbf16>
    %c256 = arith.constant 256 : index
    %c0_2 = arith.constant 0 : index
    %2 = vector.load %arg0[%c256, %c0_2] : memref<432x128xbf16, #tpu.memory_space<vmem>>, vector<128x4xbf16>
    %c384 = arith.constant 384 : index
    %c0_3 = arith.constant 0 : index
    %3 = vector.load %arg0[%c384, %c0_3] : memref<432x128xbf16, #tpu.memory_space<vmem>>, vector<4x4xbf16>
    %c400 = arith.constant 400 : index
    %c0_4 = arith.constant 0 : index
    %4 = vector.load %arg0[%c400, %c0_4] : memref<432x128xbf16, #tpu.memory_space<vmem>>, vector<4x2xbf16>
    %c416 = arith.constant 416 : index
    %c0_5 = arith.constant 0 : index
    %5 = vector.load %arg0[%c416, %c0_5] : memref<432x128xbf16, #tpu.memory_space<vmem>>, vector<2x4xbf16>
    %c0_6 = arith.constant 0 : index
    %c0_7 = arith.constant 0 : index
    %6 = vector.load %arg1[%c0_6, %c0_7] : memref<8x128xf32, #tpu.memory_space<vmem>>, vector<1x4xf32>
    %c1 = arith.constant 1 : index
    %c0_8 = arith.constant 0 : index
    %7 = vector.load %arg1[%c1, %c0_8] : memref<8x128xf32, #tpu.memory_space<vmem>>, vector<1x4xf32>
    %c2 = arith.constant 2 : index
    %c0_9 = arith.constant 0 : index
    %8 = vector.load %arg1[%c2, %c0_9] : memref<8x128xf32, #tpu.memory_space<vmem>>, vector<1x2xf32>
    %c3 = arith.constant 3 : index
    %c0_10 = arith.constant 0 : index
    %9 = vector.load %arg1[%c3, %c0_10] : memref<8x128xf32, #tpu.memory_space<vmem>>, vector<1x4xf32>
    %cst = arith.constant dense<0.000000e+00> : vector<128x4xf32>
    %10 = tpu.matmul %1, %2, %cst {dimension_numbers = #tpu.dot_dimension_numbers<[1], [0], [0], [1], [0, 0, 1, 1], [], []>} : vector<128x128xbf16>, vector<128x4xbf16>, vector<128x4xf32> -> vector<128x4xf32>
    %11 = arith.truncf %10 : vector<128x4xf32> to vector<128x4xbf16>
    %cst_11 = arith.constant dense<0.000000e+00> : vector<128x4xf32>
    %12 = tpu.matmul %0, %11, %cst_11 {dimension_numbers = #tpu.dot_dimension_numbers<[1], [0], [0], [1], [0, 0, 1, 1], [], []>} : vector<128x128xbf16>, vector<128x4xbf16>, vector<128x4xf32> -> vector<128x4xf32>
    %13 = vector.broadcast %6 : vector<1x4xf32> to vector<128x4xf32>
    %14 = arith.addf %12, %13 : vector<128x4xf32>
    %15 = math.tanh %14 : vector<128x4xf32>
    %16 = arith.truncf %15 : vector<128x4xf32> to vector<128x4xbf16>
    %cst_12 = arith.constant dense<0.000000e+00> : vector<128x4xf32>
    %17 = tpu.matmul %16, %3, %cst_12 {dimension_numbers = #tpu.dot_dimension_numbers<[1], [0], [0], [1], [0, 0, 1, 1], [], []>} : vector<128x4xbf16>, vector<4x4xbf16>, vector<128x4xf32> -> vector<128x4xf32>
    %18 = arith.truncf %17 : vector<128x4xf32> to vector<128x4xbf16>
    %cst_13 = arith.constant dense<0.000000e+00> : vector<128x4xf32>
    %19 = tpu.matmul %0, %18, %cst_13 {dimension_numbers = #tpu.dot_dimension_numbers<[1], [0], [0], [1], [0, 0, 1, 1], [], []>} : vector<128x128xbf16>, vector<128x4xbf16>, vector<128x4xf32> -> vector<128x4xf32>
    %20 = vector.broadcast %7 : vector<1x4xf32> to vector<128x4xf32>
    %21 = arith.addf %19, %20 : vector<128x4xf32>
    %22 = math.tanh %21 : vector<128x4xf32>
    %23 = arith.truncf %22 : vector<128x4xf32> to vector<128x4xbf16>
    %cst_14 = arith.constant dense<0.000000e+00> : vector<128x2xf32>
    %24 = tpu.matmul %23, %4, %cst_14 {dimension_numbers = #tpu.dot_dimension_numbers<[1], [0], [0], [1], [0, 0, 1, 1], [], []>} : vector<128x4xbf16>, vector<4x2xbf16>, vector<128x2xf32> -> vector<128x2xf32>
    %25 = arith.truncf %24 : vector<128x2xf32> to vector<128x2xbf16>
    %cst_15 = arith.constant dense<0.000000e+00> : vector<128x2xf32>
    %26 = tpu.matmul %0, %25, %cst_15 {dimension_numbers = #tpu.dot_dimension_numbers<[1], [0], [0], [1], [0, 0, 1, 1], [], []>} : vector<128x128xbf16>, vector<128x2xbf16>, vector<128x2xf32> -> vector<128x2xf32>
    %27 = vector.broadcast %8 : vector<1x2xf32> to vector<128x2xf32>
    %28 = arith.addf %26, %27 : vector<128x2xf32>
    %29 = math.tanh %28 : vector<128x2xf32>
    %30 = arith.truncf %29 : vector<128x2xf32> to vector<128x2xbf16>
    %cst_16 = arith.constant dense<0.000000e+00> : vector<128x4xf32>
    %31 = tpu.matmul %30, %5, %cst_16 {dimension_numbers = #tpu.dot_dimension_numbers<[1], [0], [0], [1], [0, 0, 1, 1], [], []>} : vector<128x2xbf16>, vector<2x4xbf16>, vector<128x4xf32> -> vector<128x4xf32>
    %32 = vector.broadcast %9 : vector<1x4xf32> to vector<128x4xf32>
    %33 = arith.addf %31, %32 : vector<128x4xf32>
    %cst_17 = arith.constant 0.000000e+00 : f32
    %34 = vector.broadcast %cst_17 : f32 to vector<128x122xf32>
    %35 = tpu.concatenate %33, %29, %34 in 1 : vector<128x4xf32>, vector<128x2xf32>, vector<128x122xf32> -> vector<128x128xf32>
    %c0_18 = arith.constant 0 : index
    %c0_19 = arith.constant 0 : index
    %36 = vector.load %arg2[%c0_18, %c0_19] : memref<128x128xf32, #tpu.memory_space<vmem>>, vector<128x128xf32>
    tpu.vector_store %arg2[%c0_18, %c0_19], %35 {strides = array<i32>} : memref<128x128xf32, #tpu.memory_space<vmem>>, vector<128x128xf32>,
    return
  }
}

</mosaic_0001>

<llo_original>
// kernel: tpu_custom_call.1
$region0: #{tpu_custom_call.1}
  #allocation0 [shape = 'u32[]', space=smem, size = 0x4, offset = 0x4, fixed_abs, tag = 'smem constant byte address 0x4 - core index']
  #allocation1 [shape = 'u32[144,128]{1,0:T(1,128)}', space=vmem, size = 0x12000, scoped, tag = 'internal scratch']
  %s0 = inlined_call_operand.hbm [shape: bf16[432,128], index: 0, kind: input, shape index: {}]
  %s1 = inlined_call_operand.hbm [shape: f32[8,128], index: 1, kind: input, shape index: {}]
  %s2 = inlined_call_operand.hbm [shape: f32[128,128], index: 2, kind: output, shape index: {}]
  %s3 = sld [smem:[#allocation0]]
  $region26: #{tpu_custom_call.1} parent=0
    _
  %s5 = ssub.s32 1, %s3
  %s6 = scalar_select 0, %s5, %s3
  $region1: #{tpu_custom_call.1} parent=0
    #allocation2 [shape = 'u8[110592]{0}', space=vmem, size = 0x1b000, scoped, tag = 'input window, operand 0, single buffered']
    #allocation3 [shape = 's32[1]{0}', space=sflag, size = 0x4, scoped, tag = 'scoped memory for tpu_custom_call.1']
    #allocation4 [shape = 's32[1]{0}', space=sflag, size = 0x4, scoped, tag = 'scoped memory for tpu_custom_call.1']
    #allocation5 [shape = 'u8[4096]{0}', space=vmem, size = 0x1000, scoped, tag = 'input window, operand 1, single buffered']
    #allocation6 [shape = 's32[1]{0}', space=sflag, size = 0x4, scoped, tag = 'scoped memory for tpu_custom_call.1']
    #allocation7 [shape = 'u8[65536]{0}', space=vmem, size = 0x10000, scoped, tag = 'output window, operand 0, single buffered']
    %7 = vsyncpa [#allocation3], 0
    %8 = vsyncpa [#allocation6], 0
    %9 = vsyncpa [#allocation4], 0
    // Predicated region
    $region2: #{tpu_custom_call.1} parent=1 // pred_check
      _
    $region3: #{tpu_custom_call.1} parent=1 // pred_check_branch
      %11 = sbr.rel (0) target = $region5
    $region4: #{tpu_custom_call.1} parent=1 // pred_region
      %s13 = ssub.s32 3456, 3456
      %14 = vsyncadd [#allocation3], %s13
      %s15 = sshll.u32 [#allocation2], 4
      %s16 = int_to_ptr.vmem [resolvable:$true] %s15
      %21 = dma.hbm_to_vmem [thread:$0]  %s0, 3456, %s16, [#allocation3], 64, 64, 4
    $region5: #{tpu_custom_call.1} parent=1 // pred_fallthru
      _
    // Predicated region
    $region6: #{tpu_custom_call.1} parent=1 // pred_check
      _
    $region7: #{tpu_custom_call.1} parent=1 // pred_check_branch
      %23 = sbr.rel (0) target = $region9
    $region8: #{tpu_custom_call.1} parent=1 // pred_region
      %s25 = ssub.s32 128, 128
      %26 = vsyncadd [#allocation6], %s25
      %s28 = sshll.u32 [#allocation5], 4
      %s29 = int_to_ptr.vmem [resolvable:$true] %s28
      %31 = dma.hbm_to_vmem [thread:$0]  %s1, 128, %s29, [#allocation6]
    $region9: #{tpu_custom_call.1} parent=1 // pred_fallthru
      _
    // Predicated region
    $region10: #{tpu_custom_call.1} parent=1 // pred_check
      _
    $region11: #{tpu_custom_call.1} parent=1 // pred_check_branch
      %33 = sbr.rel (0) target = $region13
    $region12: #{tpu_custom_call.1} parent=1 // pred_region
      %34 = dma.done [#allocation3], 3456
    $region13: #{tpu_custom_call.1} parent=1 // pred_fallthru
      _
    // Predicated region
    $region14: #{tpu_custom_call.1} parent=1 // pred_check
      _
    $region15: #{tpu_custom_call.1} parent=1 // pred_check_branch
      %36 = sbr.rel (0) target = $region17
    $region16: #{tpu_custom_call.1} parent=1 // pred_region
      %37 = dma.done [#allocation6], 128
    $region17: #{tpu_custom_call.1} parent=1 // pred_fallthru
      _
    %v39 = vld [vmem:[#allocation2] sm:$0xf]
    %v40 = vld [vmem:[#allocation2 + $0x4] sm:$0xf]
    %v41 = vld [vmem:[#allocation2 + $0x8] sm:$0xf]
    %v42 = vld [vmem:[#allocation2 + $0xc] sm:$0xf]
    %v43 = vld [vmem:[#allocation2 + $0x10] sm:$0xf]
    %v44 = vld [vmem:[#allocation2 + $0x14] sm:$0xf]
    %v45 = vld [vmem:[#allocation2 + $0x18] sm:$0xf]
    %v46 = vld [vmem:[#allocation2 + $0x1c] sm:$0xf]
    %v47 = vld [vmem:[#allocation2 + $0x20] sm:$0xf]
    %v48 = vld [vmem:[#allocation2 + $0x24] sm:$0xf]
    %v49 = vld [vmem:[#allocation2 + $0x28] sm:$0xf]
    %v50 = vld [vmem:[#allocation2 + $0x2c] sm:$0xf]
    %v51 = vld [vmem:[#allocation2 + $0x30] sm:$0xf]
    %v52 = vld [vmem:[#allocation2 + $0x34] sm:$0xf]
    %v53 = vld [vmem:[#allocation2 + $0x38] sm:$0xf]
    %v54 = vld [vmem:[#allocation2 + $0x3c] sm:$0xf]
    %v55 = vld [vmem:[#allocation2 + $0x40] sm:$0xf]
    %v56 = vld [vmem:[#allocation2 + $0x44] sm:$0xf]
    %v57 = vld [vmem:[#allocation2 + $0x48] sm:$0xf]
    %v58 = vld [vmem:[#allocation2 + $0x4c] sm:$0xf]
    %v59 = vld [vmem:[#allocation2 + $0x50] sm:$0xf]
    %v60 = vld [vmem:[#allocation2 + $0x54] sm:$0xf]
    %v61 = vld [vmem:[#allocation2 + $0x58] sm:$0xf]
    %v62 = vld [vmem:[#allocation2 + $0x5c] sm:$0xf]
    %v63 = vld [vmem:[#allocation2 + $0x60] sm:$0xf]
    %v64 = vld [vmem:[#allocation2 + $0x64] sm:$0xf]
    %v65 = vld [vmem:[#allocation2 + $0x68] sm:$0xf]
    %v66 = vld [vmem:[#allocation2 + $0x6c] sm:$0xf]
    %v67 = vld [vmem:[#allocation2 + $0x70] sm:$0xf]
    %v68 = vld [vmem:[#allocation2 + $0x74] sm:$0xf]
    %v69 = vld [vmem:[#allocation2 + $0x78] sm:$0xf]
    %v70 = vld [vmem:[#allocation2 + $0x7c] sm:$0xf]
    %v71 = vld [vmem:[#allocation2 + $0x80] sm:$0xf]
    %v72 = vld [vmem:[#allocation2 + $0x84] sm:$0xf]
    %v73 = vld [vmem:[#allocation2 + $0x88] sm:$0xf]
    %v74 = vld [vmem:[#allocation2 + $0x8c] sm:$0xf]
    %v75 = vld [vmem:[#allocation2 + $0x90] sm:$0xf]
    %v76 = vld [vmem:[#allocation2 + $0x94] sm:$0xf]
    %v77 = vld [vmem:[#allocation2 + $0x98] sm:$0xf]
    %v78 = vld [vmem:[#allocation2 + $0x9c] sm:$0xf]
    %v79 = vld [vmem:[#allocation2 + $0xa0] sm:$0xf]
    %v80 = vld [vmem:[#allocation2 + $0xa4] sm:$0xf]
    %v81 = vld [vmem:[#allocation2 + $0xa8] sm:$0xf]
    %v82 = vld [vmem:[#allocation2 + $0xac] sm:$0xf]
    %v83 = vld [vmem:[#allocation2 + $0xb0] sm:$0xf]
    %v84 = vld [vmem:[#allocation2 + $0xb4] sm:$0xf]
    %v85 = vld [vmem:[#allocation2 + $0xb8] sm:$0xf]
    %v86 = vld [vmem:[#allocation2 + $0xbc] sm:$0xf]
    %v87 = vld [vmem:[#allocation2 + $0xc0] sm:$0x3]
    %v88 = vld [vmem:[#allocation2 + $0xc8] sm:$0x3]
    %v89 = vld [vmem:[#allocation2 + $0xd0] sm:$0x1]
    %v90 = vld [vmem:[#allocation5] sm:$0x1]
    %v91 = vld [vmem:[#allocation5 + $0x1] sm:$0x1]
    %v92 = vld [vmem:[#allocation5 + $0x2] sm:$0x1]
    %v93 = vld [vmem:[#allocation5 + $0x3] sm:$0x1]
    %v110 = vunpack.c.l.b16 %v55
    %v111 = vunpack.c.l.b16 %v56
    %v112 = vunpack.c.l.b16 %v57
    %v113 = vunpack.c.l.b16 %v58
    %v114 = vunpack.c.l.b16 %v59
    %v115 = vunpack.c.l.b16 %v60
    %v116 = vunpack.c.l.b16 %v61
    %v117 = vunpack.c.l.b16 %v62
    %v118 = vunpack.c.l.b16 %v63
    %v119 = vunpack.c.l.b16 %v64
    %v120 = vunpack.c.l.b16 %v65
    %v121 = vunpack.c.l.b16 %v66
    %v122 = vunpack.c.l.b16 %v67
    %v123 = vunpack.c.l.b16 %v68
    %v124 = vunpack.c.l.b16 %v69
    %v125 = vunpack.c.l.b16 %v70
    %v126 = vpack.c.b16 %v111, %v110
    %v127 = vpack.c.b16 %v113, %v112
    %v128 = vpack.c.b16 %v115, %v114
    %v129 = vpack.c.b16 %v117, %v116
    %v130 = vpack.c.b16 %v119, %v118
    %v131 = vpack.c.b16 %v121, %v120
    %v132 = vpack.c.b16 %v123, %v122
    %v133 = vpack.c.b16 %v125, %v124
    %v158 = vunpack.c.l.b16 %v71
    %v159 = vunpack.c.l.b16 %v72
    %v160 = vunpack.c.l.b16 %v73
    %v161 = vunpack.c.l.b16 %v74
    %v162 = vunpack.c.l.b16 %v75
    %v163 = vunpack.c.l.b16 %v76
    %v164 = vunpack.c.l.b16 %v77
    %v165 = vunpack.c.l.b16 %v78
    %v166 = vunpack.c.l.b16 %v79
    %v167 = vunpack.c.l.b16 %v80
    %v168 = vunpack.c.l.b16 %v81
    %v169 = vunpack.c.l.b16 %v82
    %v170 = vunpack.c.l.b16 %v83
    %v171 = vunpack.c.l.b16 %v84
    %v172 = vunpack.c.l.b16 %v85
    %v173 = vunpack.c.l.b16 %v86
    %v174 = vpack.c.b16 %v159, %v158
    %v175 = vpack.c.b16 %v161, %v160
    %v176 = vpack.c.b16 %v163, %v162
    %v177 = vpack.c.b16 %v165, %v164
    %v178 = vpack.c.b16 %v167, %v166
    %v179 = vpack.c.b16 %v169, %v168
    %v180 = vpack.c.b16 %v171, %v170
    %v181 = vpack.c.b16 %v173, %v172
    %190 = vmatprep.subr.bf16.mxu0 0
    %191 = vmatpush1.bf16.msra.mxu0 %v174
    %192 = vmatprep.subr.bf16.mxu0 0
    %193 = vmatpush1.bf16.msra.mxu0 %v175
    %194 = vmatprep.subr.bf16.mxu0 0
    %195 = vmatpush1.bf16.msra.mxu0 %v176
    %196 = vmatprep.subr.bf16.mxu0 0
    %197 = vmatpush1.bf16.msra.mxu0 %v177
    %198 = vmatprep.subr.bf16.mxu0 0
    %199 = vmatpush1.bf16.msra.mxu0 %v178
    %200 = vmatprep.subr.bf16.mxu0 0
    %201 = vmatpush1.bf16.msra.mxu0 %v179
    %202 = vmatprep.subr.bf16.mxu0 0
    %203 = vmatpush1.bf16.msra.mxu0 %v180
    %204 = vmatprep.subr.bf16.mxu0 0
    %205 = vmatpush1.bf16.msra.mxu0 %v181
    %206 = vmatprep.subr.bf16.mxu0 0
    %207 = vmatpush1.bf16.msra.mxu0 0
    %208 = vmatprep.subr.bf16.mxu0 0
    %209 = vmatpush1.bf16.msra.mxu0 0
    %210 = vmatprep.subr.bf16.mxu0 0
    %211 = vmatpush1.bf16.msra.mxu0 0
    %212 = vmatprep.subr.bf16.mxu0 0
    %213 = vmatpush1.bf16.msra.mxu0 0
    %214 = vmatprep.subr.bf16.mxu0 0
    %215 = vmatpush1.bf16.msra.mxu0 0
    %216 = vmatprep.subr.bf16.mxu0 0
    %217 = vmatpush1.bf16.msra.mxu0 0
    %218 = vmatprep.subr.bf16.mxu0 0
    %219 = vmatpush1.bf16.msra.mxu0 0
    %220 = vmatprep.subr.bf16.mxu0 0
    %221 = vmatpush1.bf16.msra.mxu0 0
    %222 = vmatprep.mubr.bf16.mxu0 0
    %223 = vmatmul.mubr.bf16.gmra.mrb[0].mxu0 %v126
    %v224 = vpop.f32.mrb[0].mxu0
    %v225 = vadd.f32 0.0, %v224
    %v226 = vpop.f32.mrb[0].mxu0
    %v227 = vpop.f32.mrb[0].mxu0
    %v228 = vadd.f32 0.0, %v227
    %v229 = vpop.f32.mrb[0].mxu0
    %230 = vmatprep.mubr.bf16.mxu0 0
    %231 = vmatmul.mubr.bf16.gmra.mrb[0].mxu0 %v127
    %v232 = vpop.f32.mrb[0].mxu0
    %v233 = vadd.f32 0.0, %v232
    %v234 = vpop.f32.mrb[0].mxu0
    %v235 = vpop.f32.mrb[0].mxu0
    %v236 = vadd.f32 0.0, %v235
    %v237 = vpop.f32.mrb[0].mxu0
    %238 = vmatprep.mubr.bf16.mxu0 0
    %239 = vmatmul.mubr.bf16.gmra.mrb[0].mxu0 %v128
    %v240 = vpop.f32.mrb[0].mxu0
    %v241 = vadd.f32 0.0, %v240
    %v242 = vpop.f32.mrb[0].mxu0
    %v243 = vpop.f32.mrb[0].mxu0
    %v244 = vadd.f32 0.0, %v243
    %v245 = vpop.f32.mrb[0].mxu0
    %246 = vmatprep.mubr.bf16.mxu0 0
    %247 = vmatmul.mubr.bf16.gmra.mrb[0].mxu0 %v129
    %v248 = vpop.f32.mrb[0].mxu0
    %v249 = vadd.f32 0.0, %v248
    %v250 = vpop.f32.mrb[0].mxu0
    %v251 = vpop.f32.mrb[0].mxu0
    %v252 = vadd.f32 0.0, %v251
    %v253 = vpop.f32.mrb[0].mxu0
    %254 = vmatprep.mubr.bf16.mxu0 0
    %255 = vmatmul.mubr.bf16.gmra.mrb[0].mxu0 %v130
    %v256 = vpop.f32.mrb[0].mxu0
    %v257 = vadd.f32 0.0, %v256
    %v258 = vpop.f32.mrb[0].mxu0
    %v259 = vpop.f32.mrb[0].mxu0
    %v260 = vadd.f32 0.0, %v259
    %v261 = vpop.f32.mrb[0].mxu0
    %262 = vmatprep.mubr.bf16.mxu0 0
    %263 = vmatmul.mubr.bf16.gmra.mrb[0].mxu0 %v131
    %v264 = vpop.f32.mrb[0].mxu0
    %v265 = vadd.f32 0.0, %v264
    %v266 = vpop.f32.mrb[0].mxu0
    %v267 = vpop.f32.mrb[0].mxu0
    %v268 = vadd.f32 0.0, %v267
    %v269 = vpop.f32.mrb[0].mxu0
    %270 = vmatprep.mubr.bf16.mxu0 0
    %271 = vmatmul.mubr.bf16.gmra.mrb[0].mxu0 %v132
    %v272 = vpop.f32.mrb[0].mxu0
    %v273 = vadd.f32 0.0, %v272
    %v274 = vpop.f32.mrb[0].mxu0
    %v275 = vpop.f32.mrb[0].mxu0
    %v276 = vadd.f32 0.0, %v275
    %v277 = vpop.f32.mrb[0].mxu0
    %278 = vmatprep.mubr.bf16.mxu0 0
    %279 = vmatmul.mubr.bf16.gmra.mrb[0].mxu0 %v133
    %v280 = vpop.f32.mrb[0].mxu0
    %v281 = vadd.f32 0.0, %v280
    %v282 = vpop.f32.mrb[0].mxu0
    %v283 = vpop.f32.mrb[0].mxu0
    %v284 = vadd.f32 0.0, %v283
    %v285 = vpop.f32.mrb[0].mxu0
    %286 = vdwg.mxu0
    %v287 = vpack.c.bf16 %v228, %v225
    %v288 = vpack.c.bf16 %v236, %v233
    %v289 = vpack.c.bf16 %v244, %v241
    %v290 = vpack.c.bf16 %v252, %v249
    %v291 = vpack.c.bf16 %v260, %v257
    %v292 = vpack.c.bf16 %v268, %v265
    %v293 = vpack.c.bf16 %v276, %v273
    %v294 = vpack.c.bf16 %v284, %v281
    %v295 = vlaneseq
    %v296 = vshrl.u32 %v295, 7
    %v297 = vsub.s32 0, %v296
    %v298 = vrot.slane %v90, %v297
    %v315 = vunpack.c.l.b16 %v39
    %v316 = vunpack.c.l.b16 %v40
    %v317 = vunpack.c.l.b16 %v41
    %v318 = vunpack.c.l.b16 %v42
    %v319 = vunpack.c.l.b16 %v43
    %v320 = vunpack.c.l.b16 %v44
    %v321 = vunpack.c.l.b16 %v45
    %v322 = vunpack.c.l.b16 %v46
    %v323 = vunpack.c.l.b16 %v47
    %v324 = vunpack.c.l.b16 %v48
    %v325 = vunpack.c.l.b16 %v49
    %v326 = vunpack.c.l.b16 %v50
    %v327 = vunpack.c.l.b16 %v51
    %v328 = vunpack.c.l.b16 %v52
    %v329 = vunpack.c.l.b16 %v53
    %v330 = vunpack.c.l.b16 %v54
    %v331 = vpack.c.b16 %v316, %v315
    %v332 = vpack.c.b16 %v318, %v317
    %v333 = vpack.c.b16 %v320, %v319
    %v334 = vpack.c.b16 %v322, %v321
    %v335 = vpack.c.b16 %v324, %v323
    %v336 = vpack.c.b16 %v326, %v325
    %v337 = vpack.c.b16 %v328, %v327
    %v338 = vpack.c.b16 %v330, %v329
    %347 = vmatprep.subr.bf16.mxu0 0
    %348 = vmatpush1.bf16.msra.mxu0 %v287
    %349 = vmatprep.subr.bf16.mxu0 0
    %350 = vmatpush1.bf16.msra.mxu0 %v288
    %351 = vmatprep.subr.bf16.mxu0 0
    %352 = vmatpush1.bf16.msra.mxu0 %v289
    %353 = vmatprep.subr.bf16.mxu0 0
    %354 = vmatpush1.bf16.msra.mxu0 %v290
    %355 = vmatprep.subr.bf16.mxu0 0
    %356 = vmatpush1.bf16.msra.mxu0 %v291
    %357 = vmatprep.subr.bf16.mxu0 0
    %358 = vmatpush1.bf16.msra.mxu0 %v292
    %359 = vmatprep.subr.bf16.mxu0 0
    %360 = vmatpush1.bf16.msra.mxu0 %v293
    %361 = vmatprep.subr.bf16.mxu0 0
    %362 = vmatpush1.bf16.msra.mxu0 %v294
    %363 = vmatprep.subr.bf16.mxu0 0
    %364 = vmatpush1.bf16.msra.mxu0 0
    %365 = vmatprep.subr.bf16.mxu0 0
    %366 = vmatpush1.bf16.msra.mxu0 0
    %367 = vmatprep.subr.bf16.mxu0 0
    %368 = vmatpush1.bf16.msra.mxu0 0
    %369 = vmatprep.subr.bf16.mxu0 0
    %370 = vmatpush1.bf16.msra.mxu0 0
    %371 = vmatprep.subr.bf16.mxu0 0
    %372 = vmatpush1.bf16.msra.mxu0 0
    %373 = vmatprep.subr.bf16.mxu0 0
    %374 = vmatpush1.bf16.msra.mxu0 0
    %375 = vmatprep.subr.bf16.mxu0 0
    %376 = vmatpush1.bf16.msra.mxu0 0
    %377 = vmatprep.subr.bf16.mxu0 0
    %378 = vmatpush1.bf16.msra.mxu0 0
    %379 = vmatprep.mubr.bf16.mxu0 0
    %380 = vmatmul.mubr.bf16.gmra.mrb[0].mxu0 %v331
    %v381 = vpop.f32.mrb[0].mxu0
    %v382 = vadd.f32 %v298, %v381
    %v383 = vpop.f32.mrb[0].mxu0
    %v384 = vpop.f32.mrb[0].mxu0
    %v385 = vadd.f32 %v298, %v384
    %v386 = vpop.f32.mrb[0].mxu0
    %387 = vmatprep.mubr.bf16.mxu0 0
    %388 = vmatmul.mubr.bf16.gmra.mrb[0].mxu0 %v332
    %v389 = vpop.f32.mrb[0].mxu0
    %v390 = vadd.f32 %v298, %v389
    %v391 = vpop.f32.mrb[0].mxu0
    %v392 = vpop.f32.mrb[0].mxu0
    %v393 = vadd.f32 %v298, %v392
    %v394 = vpop.f32.mrb[0].mxu0
    %395 = vmatprep.mubr.bf16.mxu0 0
    %396 = vmatmul.mubr.bf16.gmra.mrb[0].mxu0 %v333
    %v397 = vpop.f32.mrb[0].mxu0
    %v398 = vadd.f32 %v298, %v397
    %v399 = vpop.f32.mrb[0].mxu0
    %v400 = vpop.f32.mrb[0].mxu0
    %v401 = vadd.f32 %v298, %v400
    %v402 = vpop.f32.mrb[0].mxu0
    %403 = vmatprep.mubr.bf16.mxu0 0
    %404 = vmatmul.mubr.bf16.gmra.mrb[0].mxu0 %v334
    %v405 = vpop.f32.mrb[0].mxu0
    %v406 = vadd.f32 %v298, %v405
    %v407 = vpop.f32.mrb[0].mxu0
    %v408 = vpop.f32.mrb[0].mxu0
    %v409 = vadd.f32 %v298, %v408
    %v410 = vpop.f32.mrb[0].mxu0
    %411 = vmatprep.mubr.bf16.mxu0 0
    %412 = vmatmul.mubr.bf16.gmra.mrb[0].mxu0 %v335
    %v413 = vpop.f32.mrb[0].mxu0
    %v414 = vadd.f32 %v298, %v413
    %v415 = vpop.f32.mrb[0].mxu0
    %v416 = vpop.f32.mrb[0].mxu0
    %v417 = vadd.f32 %v298, %v416
    %v418 = vpop.f32.mrb[0].mxu0
    %419 = vmatprep.mubr.bf16.mxu0 0
    %420 = vmatmul.mubr.bf16.gmra.mrb[0].mxu0 %v336
    %v421 = vpop.f32.mrb[0].mxu0
    %v422 = vadd.f32 %v298, %v421
    %v423 = vpop.f32.mrb[0].mxu0
    %v424 = vpop.f32.mrb[0].mxu0
    %v425 = vadd.f32 %v298, %v424
    %v426 = vpop.f32.mrb[0].mxu0
    %427 = vmatprep.mubr.bf16.mxu0 0
    %428 = vmatmul.mubr.bf16.gmra.mrb[0].mxu0 %v337
    %v429 = vpop.f32.mrb[0].mxu0
    %v430 = vadd.f32 %v298, %v429
    %v431 = vpop.f32.mrb[0].mxu0
    %v432 = vpop.f32.mrb[0].mxu0
    %v433 = vadd.f32 %v298, %v432
    %v434 = vpop.f32.mrb[0].mxu0
    %435 = vmatprep.mubr.bf16.mxu0 0
    %436 = vmatmul.mubr.bf16.gmra.mrb[0].mxu0 %v338
    %v437 = vpop.f32.mrb[0].mxu0
    %v438 = vadd.f32 %v298, %v437
    %v439 = vpop.f32.mrb[0].mxu0
    %v440 = vpop.f32.mrb[0].mxu0
    %v441 = vadd.f32 %v298, %v440
    %v442 = vpop.f32.mrb[0].mxu0
    %443 = vdwg.mxu0
    %v444 = vtanh.pop %v382
    %v445 = vtanh.pop %v385
    %v446 = vtanh.pop %v390
    %v447 = vtanh.pop %v393
    %v448 = vtanh.pop %v398
    %v449 = vtanh.pop %v401
    %v450 = vtanh.pop %v406
    %v451 = vtanh.pop %v409
    %v452 = vtanh.pop %v414
    %v453 = vtanh.pop %v417
    %v454 = vtanh.pop %v422
    %v455 = vtanh.pop %v425
    %v456 = vtanh.pop %v430
    %v457 = vtanh.pop %v433
    %v458 = vtanh.pop %v438
    %v459 = vtanh.pop %v441
    %v460 = vpack.c.bf16 %v445, %v444
    %v461 = vpack.c.bf16 %v447, %v446
    %v462 = vpack.c.bf16 %v449, %v448
    %v463 = vpack.c.bf16 %v451, %v450
    %v464 = vpack.c.bf16 %v453, %v452
    %v465 = vpack.c.bf16 %v455, %v454
    %v466 = vpack.c.bf16 %v457, %v456
    %v467 = vpack.c.bf16 %v459, %v458
    %vm468 = vcmask 31744
    %v470 = vsel %vm468, %v460, 0
    %v473 = vsel %vm468, %v461, 0
    %v476 = vsel %vm468, %v462, 0
    %v479 = vsel %vm468, %v463, 0
    %v482 = vsel %vm468, %v464, 0
    %v485 = vsel %vm468, %v465, 0
    %v488 = vsel %vm468, %v466, 0
    %v491 = vsel %vm468, %v467, 0
    %vm493 = vcmask 1041408
    %v495 = vsel %vm493, %v87, 0
    %497 = vmatprep.subr.bf16.mxu0 0
    %498 = vmatpush1.bf16.msra.mxu0 %v495
    %499 = vmatprep.subr.bf16.mxu0 0
    %500 = vmatpush1.bf16.msra.mxu0 0
    %501 = vmatprep.subr.bf16.mxu0 0
    %502 = vmatpush1.bf16.msra.mxu0 0
    %503 = vmatprep.subr.bf16.mxu0 0
    %504 = vmatpush1.bf16.msra.mxu0 0
    %505 = vmatprep.subr.bf16.mxu0 0
    %506 = vmatpush1.bf16.msra.mxu0 0
    %507 = vmatprep.subr.bf16.mxu0 0
    %508 = vmatpush1.bf16.msra.mxu0 0
    %509 = vmatprep.subr.bf16.mxu0 0
    %510 = vmatpush1.bf16.msra.mxu0 0
    %511 = vmatprep.subr.bf16.mxu0 0
    %512 = vmatpush1.bf16.msra.mxu0 0
    %513 = vmatprep.subr.bf16.mxu0 0
    %514 = vmatpush1.bf16.msra.mxu0 0
    %515 = vmatprep.subr.bf16.mxu0 0
    %516 = vmatpush1.bf16.msra.mxu0 0
    %517 = vmatprep.subr.bf16.mxu0 0
    %518 = vmatpush1.bf16.msra.mxu0 0
    %519 = vmatprep.subr.bf16.mxu0 0
    %520 = vmatpush1.bf16.msra.mxu0 0
    %521 = vmatprep.subr.bf16.mxu0 0
    %522 = vmatpush1.bf16.msra.mxu0 0
    %523 = vmatprep.subr.bf16.mxu0 0
    %524 = vmatpush1.bf16.msra.mxu0 0
    %525 = vmatprep.subr.bf16.mxu0 0
    %526 = vmatpush1.bf16.msra.mxu0 0
    %527 = vmatprep.subr.bf16.mxu0 0
    %528 = vmatpush1.bf16.msra.mxu0 0
    %529 = vmatprep.mubr.bf16.mxu0 0
    %530 = vmatmul.mubr.bf16.gmra.mrb[0].mxu0 %v470
    %v531 = vpop.f32.mrb[0].mxu0
    %v532 = vadd.f32 0.0, %v531
    %v533 = vpop.f32.mrb[0].mxu0
    %v534 = vpop.f32.mrb[0].mxu0
    %v535 = vadd.f32 0.0, %v534
    %v536 = vpop.f32.mrb[0].mxu0
    %537 = vmatprep.mubr.bf16.mxu0 0
    %538 = vmatmul.mubr.bf16.gmra.mrb[0].mxu0 %v473
    %v539 = vpop.f32.mrb[0].mxu0
    %v540 = vadd.f32 0.0, %v539
    %v541 = vpop.f32.mrb[0].mxu0
    %v542 = vpop.f32.mrb[0].mxu0
    %v543 = vadd.f32 0.0, %v542
    %v544 = vpop.f32.mrb[0].mxu0
    %545 = vmatprep.mubr.bf16.mxu0 0
    %546 = vmatmul.mubr.bf16.gmra.mrb[0].mxu0 %v476
    %v547 = vpop.f32.mrb[0].mxu0
    %v548 = vadd.f32 0.0, %v547
    %v549 = vpop.f32.mrb[0].mxu0
    %v550 = vpop.f32.mrb[0].mxu0
    %v551 = vadd.f32 0.0, %v550
    %v552 = vpop.f32.mrb[0].mxu0
    %553 = vmatprep.mubr.bf16.mxu0 0
    %554 = vmatmul.mubr.bf16.gmra.mrb[0].mxu0 %v479
    %v555 = vpop.f32.mrb[0].mxu0
    %v556 = vadd.f32 0.0, %v555
    %v557 = vpop.f32.mrb[0].mxu0
    %v558 = vpop.f32.mrb[0].mxu0
    %v559 = vadd.f32 0.0, %v558
    %v560 = vpop.f32.mrb[0].mxu0
    %561 = vmatprep.mubr.bf16.mxu0 0
    %562 = vmatmul.mubr.bf16.gmra.mrb[0].mxu0 %v482
    %v563 = vpop.f32.mrb[0].mxu0
    %v564 = vadd.f32 0.0, %v563
    %v565 = vpop.f32.mrb[0].mxu0
    %v566 = vpop.f32.mrb[0].mxu0
    %v567 = vadd.f32 0.0, %v566
    %v568 = vpop.f32.mrb[0].mxu0
    %569 = vmatprep.mubr.bf16.mxu0 0
    %570 = vmatmul.mubr.bf16.gmra.mrb[0].mxu0 %v485
    %v571 = vpop.f32.mrb[0].mxu0
    %v572 = vadd.f32 0.0, %v571
    %v573 = vpop.f32.mrb[0].mxu0
    %v574 = vpop.f32.mrb[0].mxu0
    %v575 = vadd.f32 0.0, %v574
    %v576 = vpop.f32.mrb[0].mxu0
    %577 = vmatprep.mubr.bf16.mxu0 0
    %578 = vmatmul.mubr.bf16.gmra.mrb[0].mxu0 %v488
    %v579 = vpop.f32.mrb[0].mxu0
    %v580 = vadd.f32 0.0, %v579
    %v581 = vpop.f32.mrb[0].mxu0
    %v582 = vpop.f32.mrb[0].mxu0
    %v583 = vadd.f32 0.0, %v582
    %v584 = vpop.f32.mrb[0].mxu0
    %585 = vmatprep.mubr.bf16.mxu0 0
    %586 = vmatmul.mubr.bf16.gmra.mrb[0].mxu0 %v491
    %v587 = vpop.f32.mrb[0].mxu0
    %v588 = vadd.f32 0.0, %v587
    %v589 = vpop.f32.mrb[0].mxu0
    %v590 = vpop.f32.mrb[0].mxu0
    %v591 = vadd.f32 0.0, %v590
    %v592 = vpop.f32.mrb[0].mxu0
    %593 = vdwg.mxu0
    %v594 = vpack.c.bf16 %v535, %v532
    %v595 = vpack.c.bf16 %v543, %v540
    %v596 = vpack.c.bf16 %v551, %v548
    %v597 = vpack.c.bf16 %v559, %v556
    %v598 = vpack.c.bf16 %v567, %v564
    %v599 = vpack.c.bf16 %v575, %v572
    %v600 = vpack.c.bf16 %v583, %v580
    %v601 = vpack.c.bf16 %v591, %v588
    %v602 = vlaneseq
    %v603 = vshrl.u32 %v602, 7
    %v604 = vsub.s32 0, %v603
    %v605 = vrot.slane %v91, %v604
    %606 = vmatprep.subr.bf16.mxu0 0
    %607 = vmatpush1.bf16.msra.mxu0 %v594
    %608 = vmatprep.subr.bf16.mxu0 0
    %609 = vmatpush1.bf16.msra.mxu0 %v595
    %610 = vmatprep.subr.bf16.mxu0 0
    %611 = vmatpush1.bf16.msra.mxu0 %v596
    %612 = vmatprep.subr.bf16.mxu0 0
    %613 = vmatpush1.bf16.msra.mxu0 %v597
    %614 = vmatprep.subr.bf16.mxu0 0
    %615 = vmatpush1.bf16.msra.mxu0 %v598
    %616 = vmatprep.subr.bf16.mxu0 0
    %617 = vmatpush1.bf16.msra.mxu0 %v599
    %618 = vmatprep.subr.bf16.mxu0 0
    %619 = vmatpush1.bf16.msra.mxu0 %v600
    %620 = vmatprep.subr.bf16.mxu0 0
    %621 = vmatpush1.bf16.msra.mxu0 %v601
    %622 = vmatprep.subr.bf16.mxu0 0
    %623 = vmatpush1.bf16.msra.mxu0 0
    %624 = vmatprep.subr.bf16.mxu0 0
    %625 = vmatpush1.bf16.msra.mxu0 0
    %626 = vmatprep.subr.bf16.mxu0 0
    %627 = vmatpush1.bf16.msra.mxu0 0
    %628 = vmatprep.subr.bf16.mxu0 0
    %629 = vmatpush1.bf16.msra.mxu0 0
    %630 = vmatprep.subr.bf16.mxu0 0
    %631 = vmatpush1.bf16.msra.mxu0 0
    %632 = vmatprep.subr.bf16.mxu0 0
    %633 = vmatpush1.bf16.msra.mxu0 0
    %634 = vmatprep.subr.bf16.mxu0 0
    %635 = vmatpush1.bf16.msra.mxu0 0
    %636 = vmatprep.subr.bf16.mxu0 0
    %637 = vmatpush1.bf16.msra.mxu0 0
    %638 = vmatprep.mubr.bf16.mxu0 0
    %639 = vmatmul.mubr.bf16.gmra.mrb[0].mxu0 %v331
    %v640 = vpop.f32.mrb[0].mxu0
    %v641 = vadd.f32 %v605, %v640
    %v642 = vpop.f32.mrb[0].mxu0
    %v643 = vpop.f32.mrb[0].mxu0
    %v644 = vadd.f32 %v605, %v643
    %v645 = vpop.f32.mrb[0].mxu0
    %646 = vmatprep.mubr.bf16.mxu0 0
    %647 = vmatmul.mubr.bf16.gmra.mrb[0].mxu0 %v332
    %v648 = vpop.f32.mrb[0].mxu0
    %v649 = vadd.f32 %v605, %v648
    %v650 = vpop.f32.mrb[0].mxu0
    %v651 = vpop.f32.mrb[0].mxu0
    %v652 = vadd.f32 %v605, %v651
    %v653 = vpop.f32.mrb[0].mxu0
    %654 = vmatprep.mubr.bf16.mxu0 0
    %655 = vmatmul.mubr.bf16.gmra.mrb[0].mxu0 %v333
    %v656 = vpop.f32.mrb[0].mxu0
    %v657 = vadd.f32 %v605, %v656
    %v658 = vpop.f32.mrb[0].mxu0
    %v659 = vpop.f32.mrb[0].mxu0
    %v660 = vadd.f32 %v605, %v659
    %v661 = vpop.f32.mrb[0].mxu0
    %662 = vmatprep.mubr.bf16.mxu0 0
    %663 = vmatmul.mubr.bf16.gmra.mrb[0].mxu0 %v334
    %v664 = vpop.f32.mrb[0].mxu0
    %v665 = vadd.f32 %v605, %v664
    %v666 = vpop.f32.mrb[0].mxu0
    %v667 = vpop.f32.mrb[0].mxu0
    %v668 = vadd.f32 %v605, %v667
    %v669 = vpop.f32.mrb[0].mxu0
    %670 = vmatprep.mubr.bf16.mxu0 0
    %671 = vmatmul.mubr.bf16.gmra.mrb[0].mxu0 %v335
    %v672 = vpop.f32.mrb[0].mxu0
    %v673 = vadd.f32 %v605, %v672
    %v674 = vpop.f32.mrb[0].mxu0
    %v675 = vpop.f32.mrb[0].mxu0
    %v676 = vadd.f32 %v605, %v675
    %v677 = vpop.f32.mrb[0].mxu0
    %678 = vmatprep.mubr.bf16.mxu0 0
    %679 = vmatmul.mubr.bf16.gmra.mrb[0].mxu0 %v336
    %v680 = vpop.f32.mrb[0].mxu0
    %v681 = vadd.f32 %v605, %v680
    %v682 = vpop.f32.mrb[0].mxu0
    %v683 = vpop.f32.mrb[0].mxu0
    %v684 = vadd.f32 %v605, %v683
    %v685 = vpop.f32.mrb[0].mxu0
    %686 = vmatprep.mubr.bf16.mxu0 0
    %687 = vmatmul.mubr.bf16.gmra.mrb[0].mxu0 %v337
    %v688 = vpop.f32.mrb[0].mxu0
    %v689 = vadd.f32 %v605, %v688
    %v690 = vpop.f32.mrb[0].mxu0
    %v691 = vpop.f32.mrb[0].mxu0
    %v692 = vadd.f32 %v605, %v691
    %v693 = vpop.f32.mrb[0].mxu0
    %694 = vmatprep.mubr.bf16.mxu0 0
    %695 = vmatmul.mubr.bf16.gmra.mrb[0].mxu0 %v338
    %v696 = vpop.f32.mrb[0].mxu0
    %v697 = vadd.f32 %v605, %v696
    %v698 = vpop.f32.mrb[0].mxu0
    %v699 = vpop.f32.mrb[0].mxu0
    %v700 = vadd.f32 %v605, %v699
    %v701 = vpop.f32.mrb[0].mxu0
    %702 = vdwg.mxu0
    %v703 = vtanh.pop %v641
    %v704 = vtanh.pop %v644
    %v705 = vtanh.pop %v649
    %v706 = vtanh.pop %v652
    %v707 = vtanh.pop %v657
    %v708 = vtanh.pop %v660
    %v709 = vtanh.pop %v665
    %v710 = vtanh.pop %v668
    %v711 = vtanh.pop %v673
    %v712 = vtanh.pop %v676
    %v713 = vtanh.pop %v681
    %v714 = vtanh.pop %v684
    %v715 = vtanh.pop %v689
    %v716 = vtanh.pop %v692
    %v717 = vtanh.pop %v697
    %v718 = vtanh.pop %v700
    %v719 = vpack.c.bf16 %v704, %v703
    %v720 = vpack.c.bf16 %v706, %v705
    %v721 = vpack.c.bf16 %v708, %v707
    %v722 = vpack.c.bf16 %v710, %v709
    %v723 = vpack.c.bf16 %v712, %v711
    %v724 = vpack.c.bf16 %v714, %v713
    %v725 = vpack.c.bf16 %v716, %v715
    %v726 = vpack.c.bf16 %v718, %v717
    %v728 = vsel %vm468, %v719, 0
    %v731 = vsel %vm468, %v720, 0
    %v734 = vsel %vm468, %v721, 0
    %v737 = vsel %vm468, %v722, 0
    %v740 = vsel %vm468, %v723, 0
    %v743 = vsel %vm468, %v724, 0
    %v746 = vsel %vm468, %v725, 0
    %v749 = vsel %vm468, %v726, 0
    %v752 = vsel %vm493, %v88, 0
    %754 = vmatprep.subr.bf16.mxu0 0
    %755 = vmatpush1.bf16.msra.mxu0 %v752
    %756 = vmatprep.subr.bf16.mxu0 0
    %757 = vmatpush1.bf16.msra.mxu0 0
    %758 = vmatprep.subr.bf16.mxu0 0
    %759 = vmatpush1.bf16.msra.mxu0 0
    %760 = vmatprep.subr.bf16.mxu0 0
    %761 = vmatpush1.bf16.msra.mxu0 0
    %762 = vmatprep.subr.bf16.mxu0 0
    %763 = vmatpush1.bf16.msra.mxu0 0
    %764 = vmatprep.subr.bf16.mxu0 0
    %765 = vmatpush1.bf16.msra.mxu0 0
    %766 = vmatprep.subr.bf16.mxu0 0
    %767 = vmatpush1.bf16.msra.mxu0 0
    %768 = vmatprep.subr.bf16.mxu0 0
    %769 = vmatpush1.bf16.msra.mxu0 0
    %770 = vmatprep.subr.bf16.mxu0 0
    %771 = vmatpush1.bf16.msra.mxu0 0
    %772 = vmatprep.subr.bf16.mxu0 0
    %773 = vmatpush1.bf16.msra.mxu0 0
    %774 = vmatprep.subr.bf16.mxu0 0
    %775 = vmatpush1.bf16.msra.mxu0 0
    %776 = vmatprep.subr.bf16.mxu0 0
    %777 = vmatpush1.bf16.msra.mxu0 0
    %778 = vmatprep.subr.bf16.mxu0 0
    %779 = vmatpush1.bf16.msra.mxu0 0
    %780 = vmatprep.subr.bf16.mxu0 0
    %781 = vmatpush1.bf16.msra.mxu0 0
    %782 = vmatprep.subr.bf16.mxu0 0
    %783 = vmatpush1.bf16.msra.mxu0 0
    %784 = vmatprep.subr.bf16.mxu0 0
    %785 = vmatpush1.bf16.msra.mxu0 0
    %786 = vmatprep.mubr.bf16.mxu0 0
    %787 = vmatmul.mubr.bf16.gmra.mrb[0].mxu0 %v728
    %v788 = vpop.f32.mrb[0].mxu0
    %v789 = vadd.f32 0.0, %v788
    %v790 = vpop.f32.mrb[0].mxu0
    %v791 = vpop.f32.mrb[0].mxu0
    %v792 = vadd.f32 0.0, %v791
    %v793 = vpop.f32.mrb[0].mxu0
    %794 = vmatprep.mubr.bf16.mxu0 0
    %795 = vmatmul.mubr.bf16.gmra.mrb[0].mxu0 %v731
    %v796 = vpop.f32.mrb[0].mxu0
    %v797 = vadd.f32 0.0, %v796
    %v798 = vpop.f32.mrb[0].mxu0
    %v799 = vpop.f32.mrb[0].mxu0
    %v800 = vadd.f32 0.0, %v799
    %v801 = vpop.f32.mrb[0].mxu0
    %802 = vmatprep.mubr.bf16.mxu0 0
    %803 = vmatmul.mubr.bf16.gmra.mrb[0].mxu0 %v734
    %v804 = vpop.f32.mrb[0].mxu0
    %v805 = vadd.f32 0.0, %v804
    %v806 = vpop.f32.mrb[0].mxu0
    %v807 = vpop.f32.mrb[0].mxu0
    %v808 = vadd.f32 0.0, %v807
    %v809 = vpop.f32.mrb[0].mxu0
    %810 = vmatprep.mubr.bf16.mxu0 0
    %811 = vmatmul.mubr.bf16.gmra.mrb[0].mxu0 %v737
    %v812 = vpop.f32.mrb[0].mxu0
    %v813 = vadd.f32 0.0, %v812
    %v814 = vpop.f32.mrb[0].mxu0
    %v815 = vpop.f32.mrb[0].mxu0
    %v816 = vadd.f32 0.0, %v815
    %v817 = vpop.f32.mrb[0].mxu0
    %818 = vmatprep.mubr.bf16.mxu0 0
    %819 = vmatmul.mubr.bf16.gmra.mrb[0].mxu0 %v740
    %v820 = vpop.f32.mrb[0].mxu0
    %v821 = vadd.f32 0.0, %v820
    %v822 = vpop.f32.mrb[0].mxu0
    %v823 = vpop.f32.mrb[0].mxu0
    %v824 = vadd.f32 0.0, %v823
    %v825 = vpop.f32.mrb[0].mxu0
    %826 = vmatprep.mubr.bf16.mxu0 0
    %827 = vmatmul.mubr.bf16.gmra.mrb[0].mxu0 %v743
    %v828 = vpop.f32.mrb[0].mxu0
    %v829 = vadd.f32 0.0, %v828
    %v830 = vpop.f32.mrb[0].mxu0
    %v831 = vpop.f32.mrb[0].mxu0
    %v832 = vadd.f32 0.0, %v831
    %v833 = vpop.f32.mrb[0].mxu0
    %834 = vmatprep.mubr.bf16.mxu0 0
    %835 = vmatmul.mubr.bf16.gmra.mrb[0].mxu0 %v746
    %v836 = vpop.f32.mrb[0].mxu0
    %v837 = vadd.f32 0.0, %v836
    %v838 = vpop.f32.mrb[0].mxu0
    %v839 = vpop.f32.mrb[0].mxu0
    %v840 = vadd.f32 0.0, %v839
    %v841 = vpop.f32.mrb[0].mxu0
    %842 = vmatprep.mubr.bf16.mxu0 0
    %843 = vmatmul.mubr.bf16.gmra.mrb[0].mxu0 %v749
    %v844 = vpop.f32.mrb[0].mxu0
    %v845 = vadd.f32 0.0, %v844
    %v846 = vpop.f32.mrb[0].mxu0
    %v847 = vpop.f32.mrb[0].mxu0
    %v848 = vadd.f32 0.0, %v847
    %v849 = vpop.f32.mrb[0].mxu0
    %850 = vdwg.mxu0
    %v851 = vpack.c.bf16 %v792, %v789
    %v852 = vpack.c.bf16 %v800, %v797
    %v853 = vpack.c.bf16 %v808, %v805
    %v854 = vpack.c.bf16 %v816, %v813
    %v855 = vpack.c.bf16 %v824, %v821
    %v856 = vpack.c.bf16 %v832, %v829
    %v857 = vpack.c.bf16 %v840, %v837
    %v858 = vpack.c.bf16 %v848, %v845
    %v859 = vlaneseq
    %v860 = vshrl.u32 %v859, 7
    %v861 = vsub.s32 0, %v860
    %v862 = vrot.slane %v92, %v861
    %863 = vmatprep.subr.bf16.mxu0 0
    %864 = vmatpush1.bf16.msra.mxu0 %v851
    %865 = vmatprep.subr.bf16.mxu0 0
    %866 = vmatpush1.bf16.msra.mxu0 %v852
    %867 = vmatprep.subr.bf16.mxu0 0
    %868 = vmatpush1.bf16.msra.mxu0 %v853
    %869 = vmatprep.subr.bf16.mxu0 0
    %870 = vmatpush1.bf16.msra.mxu0 %v854
    %871 = vmatprep.subr.bf16.mxu0 0
    %872 = vmatpush1.bf16.msra.mxu0 %v855
    %873 = vmatprep.subr.bf16.mxu0 0
    %874 = vmatpush1.bf16.msra.mxu0 %v856
    %875 = vmatprep.subr.bf16.mxu0 0
    %876 = vmatpush1.bf16.msra.mxu0 %v857
    %877 = vmatprep.subr.bf16.mxu0 0
    %878 = vmatpush1.bf16.msra.mxu0 %v858
    %879 = vmatprep.subr.bf16.mxu0 0
    %880 = vmatpush1.bf16.msra.mxu0 0
    %881 = vmatprep.subr.bf16.mxu0 0
    %882 = vmatpush1.bf16.msra.mxu0 0
    %883 = vmatprep.subr.bf16.mxu0 0
    %884 = vmatpush1.bf16.msra.mxu0 0
    %885 = vmatprep.subr.bf16.mxu0 0
    %886 = vmatpush1.bf16.msra.mxu0 0
    %887 = vmatprep.subr.bf16.mxu0 0
    %888 = vmatpush1.bf16.msra.mxu0 0
    %889 = vmatprep.subr.bf16.mxu0 0
    %890 = vmatpush1.bf16.msra.mxu0 0
    %891 = vmatprep.subr.bf16.mxu0 0
    %892 = vmatpush1.bf16.msra.mxu0 0
    %893 = vmatprep.subr.bf16.mxu0 0
    %894 = vmatpush1.bf16.msra.mxu0 0
    %895 = vmatprep.mubr.bf16.mxu0 0
    %896 = vmatmul.mubr.bf16.gmra.mrb[0].mxu0 %v331
    %v897 = vpop.f32.mrb[0].mxu0
    %v898 = vadd.f32 %v862, %v897
    %v899 = vpop.f32.mrb[0].mxu0
    %v900 = vpop.f32.mrb[0].mxu0
    %v901 = vadd.f32 %v862, %v900
    %v902 = vpop.f32.mrb[0].mxu0
    %903 = vmatprep.mubr.bf16.mxu0 0
    %904 = vmatmul.mubr.bf16.gmra.mrb[0].mxu0 %v332
    %v905 = vpop.f32.mrb[0].mxu0
    %v906 = vadd.f32 %v862, %v905
    %v907 = vpop.f32.mrb[0].mxu0
    %v908 = vpop.f32.mrb[0].mxu0
    %v909 = vadd.f32 %v862, %v908
    %v910 = vpop.f32.mrb[0].mxu0
    %911 = vmatprep.mubr.bf16.mxu0 0
    %912 = vmatmul.mubr.bf16.gmra.mrb[0].mxu0 %v333
    %v913 = vpop.f32.mrb[0].mxu0
    %v914 = vadd.f32 %v862, %v913
    %v915 = vpop.f32.mrb[0].mxu0
    %v916 = vpop.f32.mrb[0].mxu0
    %v917 = vadd.f32 %v862, %v916
    %v918 = vpop.f32.mrb[0].mxu0
    %919 = vmatprep.mubr.bf16.mxu0 0
    %920 = vmatmul.mubr.bf16.gmra.mrb[0].mxu0 %v334
    %v921 = vpop.f32.mrb[0].mxu0
    %v922 = vadd.f32 %v862, %v921
    %v923 = vpop.f32.mrb[0].mxu0
    %v924 = vpop.f32.mrb[0].mxu0
    %v925 = vadd.f32 %v862, %v924
    %v926 = vpop.f32.mrb[0].mxu0
    %927 = vmatprep.mubr.bf16.mxu0 0
    %928 = vmatmul.mubr.bf16.gmra.mrb[0].mxu0 %v335
    %v929 = vpop.f32.mrb[0].mxu0
    %v930 = vadd.f32 %v862, %v929
    %v931 = vpop.f32.mrb[0].mxu0
    %v932 = vpop.f32.mrb[0].mxu0
    %v933 = vadd.f32 %v862, %v932
    %v934 = vpop.f32.mrb[0].mxu0
    %935 = vmatprep.mubr.bf16.mxu0 0
    %936 = vmatmul.mubr.bf16.gmra.mrb[0].mxu0 %v336
    %v937 = vpop.f32.mrb[0].mxu0
    %v938 = vadd.f32 %v862, %v937
    %v939 = vpop.f32.mrb[0].mxu0
    %v940 = vpop.f32.mrb[0].mxu0
    %v941 = vadd.f32 %v862, %v940
    %v942 = vpop.f32.mrb[0].mxu0
    %943 = vmatprep.mubr.bf16.mxu0 0
    %944 = vmatmul.mubr.bf16.gmra.mrb[0].mxu0 %v337
    %v945 = vpop.f32.mrb[0].mxu0
    %v946 = vadd.f32 %v862, %v945
    %v947 = vpop.f32.mrb[0].mxu0
    %v948 = vpop.f32.mrb[0].mxu0
    %v949 = vadd.f32 %v862, %v948
    %v950 = vpop.f32.mrb[0].mxu0
    %951 = vmatprep.mubr.bf16.mxu0 0
    %952 = vmatmul.mubr.bf16.gmra.mrb[0].mxu0 %v338
    %v953 = vpop.f32.mrb[0].mxu0
    %v954 = vadd.f32 %v862, %v953
    %v955 = vpop.f32.mrb[0].mxu0
    %v956 = vpop.f32.mrb[0].mxu0
    %v957 = vadd.f32 %v862, %v956
    %v958 = vpop.f32.mrb[0].mxu0
    %959 = vdwg.mxu0
    %v960 = vtanh.pop %v898
    %v961 = vtanh.pop %v901
    %v962 = vtanh.pop %v906
    %v963 = vtanh.pop %v909
    %v964 = vtanh.pop %v914
    %v965 = vtanh.pop %v917
    %v966 = vtanh.pop %v922
    %v967 = vtanh.pop %v925
    %v968 = vtanh.pop %v930
    %v969 = vtanh.pop %v933
    %v970 = vtanh.pop %v938
    %v971 = vtanh.pop %v941
    %v972 = vtanh.pop %v946
    %v973 = vtanh.pop %v949
    %v974 = vtanh.pop %v954
    %v975 = vtanh.pop %v957
    %v976 = vpack.c.bf16 %v961, %v960
    %v977 = vpack.c.bf16 %v963, %v962
    %v978 = vpack.c.bf16 %v965, %v964
    %v979 = vpack.c.bf16 %v967, %v966
    %v980 = vpack.c.bf16 %v969, %v968
    %v981 = vpack.c.bf16 %v971, %v970
    %v982 = vpack.c.bf16 %v973, %v972
    %v983 = vpack.c.bf16 %v975, %v974
    %v984 = vlaneseq
    %v985 = vshrl.u32 %v984, 7
    %v986 = vsub.s32 0, %v985
    %v987 = vrot.slane %v93, %v986
    %vm988 = vcmask 15360
    %v990 = vsel %vm988, %v976, 0
    %v993 = vsel %vm988, %v977, 0
    %v996 = vsel %vm988, %v978, 0
    %v999 = vsel %vm988, %v979, 0
    %v1002 = vsel %vm988, %v980, 0
    %v1005 = vsel %vm988, %v981, 0
    %v1008 = vsel %vm988, %v982, 0
    %v1011 = vsel %vm988, %v983, 0
    %vm1013 = vcmask 1040384
    %v1015 = vsel %vm1013, %v89, 0
    %1017 = vmatprep.subr.bf16.mxu0 0
    %1018 = vmatpush1.bf16.msra.mxu0 %v1015
    %1019 = vmatprep.subr.bf16.mxu0 0
    %1020 = vmatpush1.bf16.msra.mxu0 0
    %1021 = vmatprep.subr.bf16.mxu0 0
    %1022 = vmatpush1.bf16.msra.mxu0 0
    %1023 = vmatprep.subr.bf16.mxu0 0
    %1024 = vmatpush1.bf16.msra.mxu0 0
    %1025 = vmatprep.subr.bf16.mxu0 0
    %1026 = vmatpush1.bf16.msra.mxu0 0
    %1027 = vmatprep.subr.bf16.mxu0 0
    %1028 = vmatpush1.bf16.msra.mxu0 0
    %1029 = vmatprep.subr.bf16.mxu0 0
    %1030 = vmatpush1.bf16.msra.mxu0 0
    %1031 = vmatprep.subr.bf16.mxu0 0
    %1032 = vmatpush1.bf16.msra.mxu0 0
    %1033 = vmatprep.subr.bf16.mxu0 0
    %1034 = vmatpush1.bf16.msra.mxu0 0
    %1035 = vmatprep.subr.bf16.mxu0 0
    %1036 = vmatpush1.bf16.msra.mxu0 0
    %1037 = vmatprep.subr.bf16.mxu0 0
    %1038 = vmatpush1.bf16.msra.mxu0 0
    %1039 = vmatprep.subr.bf16.mxu0 0
    %1040 = vmatpush1.bf16.msra.mxu0 0
    %1041 = vmatprep.subr.bf16.mxu0 0
    %1042 = vmatpush1.bf16.msra.mxu0 0
    %1043 = vmatprep.subr.bf16.mxu0 0
    %1044 = vmatpush1.bf16.msra.mxu0 0
    %1045 = vmatprep.subr.bf16.mxu0 0
    %1046 = vmatpush1.bf16.msra.mxu0 0
    %1047 = vmatprep.subr.bf16.mxu0 0
    %1048 = vmatpush1.bf16.msra.mxu0 0
    %1049 = vmatprep.mubr.bf16.mxu0 0
    %1050 = vmatmul.mubr.bf16.gmra.mrb[0].mxu0 %v990
    %v1051 = vpop.f32.mrb[0].mxu0
    %v1052 = vadd.f32 %v987, %v1051
    %v1053 = vpop.f32.mrb[0].mxu0
    %v1054 = vpop.f32.mrb[0].mxu0
    %v1055 = vadd.f32 %v987, %v1054
    %v1056 = vpop.f32.mrb[0].mxu0
    %1057 = vmatprep.mubr.bf16.mxu0 0
    %1058 = vmatmul.mubr.bf16.gmra.mrb[0].mxu0 %v993
    %v1059 = vpop.f32.mrb[0].mxu0
    %v1060 = vadd.f32 %v987, %v1059
    %v1061 = vpop.f32.mrb[0].mxu0
    %v1062 = vpop.f32.mrb[0].mxu0
    %v1063 = vadd.f32 %v987, %v1062
    %v1064 = vpop.f32.mrb[0].mxu0
    %1065 = vmatprep.mubr.bf16.mxu0 0
    %1066 = vmatmul.mubr.bf16.gmra.mrb[0].mxu0 %v996
    %v1067 = vpop.f32.mrb[0].mxu0
    %v1068 = vadd.f32 %v987, %v1067
    %v1069 = vpop.f32.mrb[0].mxu0
    %v1070 = vpop.f32.mrb[0].mxu0
    %v1071 = vadd.f32 %v987, %v1070
    %v1072 = vpop.f32.mrb[0].mxu0
    %1073 = vmatprep.mubr.bf16.mxu0 0
    %1074 = vmatmul.mubr.bf16.gmra.mrb[0].mxu0 %v999
    %v1075 = vpop.f32.mrb[0].mxu0
    %v1076 = vadd.f32 %v987, %v1075
    %v1077 = vpop.f32.mrb[0].mxu0
    %v1078 = vpop.f32.mrb[0].mxu0
    %v1079 = vadd.f32 %v987, %v1078
    %v1080 = vpop.f32.mrb[0].mxu0
    %1081 = vmatprep.mubr.bf16.mxu0 0
    %1082 = vmatmul.mubr.bf16.gmra.mrb[0].mxu0 %v1002
    %v1083 = vpop.f32.mrb[0].mxu0
    %v1084 = vadd.f32 %v987, %v1083
    %v1085 = vpop.f32.mrb[0].mxu0
    %v1086 = vpop.f32.mrb[0].mxu0
    %v1087 = vadd.f32 %v987, %v1086
    %v1088 = vpop.f32.mrb[0].mxu0
    %1089 = vmatprep.mubr.bf16.mxu0 0
    %1090 = vmatmul.mubr.bf16.gmra.mrb[0].mxu0 %v1005
    %v1091 = vpop.f32.mrb[0].mxu0
    %v1092 = vadd.f32 %v987, %v1091
    %v1093 = vpop.f32.mrb[0].mxu0
    %v1094 = vpop.f32.mrb[0].mxu0
    %v1095 = vadd.f32 %v987, %v1094
    %v1096 = vpop.f32.mrb[0].mxu0
    %1097 = vmatprep.mubr.bf16.mxu0 0
    %1098 = vmatmul.mubr.bf16.gmra.mrb[0].mxu0 %v1008
    %v1099 = vpop.f32.mrb[0].mxu0
    %v1100 = vadd.f32 %v987, %v1099
    %v1101 = vpop.f32.mrb[0].mxu0
    %v1102 = vpop.f32.mrb[0].mxu0
    %v1103 = vadd.f32 %v987, %v1102
    %v1104 = vpop.f32.mrb[0].mxu0
    %1105 = vmatprep.mubr.bf16.mxu0 0
    %1106 = vmatmul.mubr.bf16.gmra.mrb[0].mxu0 %v1011
    %v1107 = vpop.f32.mrb[0].mxu0
    %v1108 = vadd.f32 %v987, %v1107
    %v1109 = vpop.f32.mrb[0].mxu0
    %v1110 = vpop.f32.mrb[0].mxu0
    %v1111 = vadd.f32 %v987, %v1110
    %v1112 = vpop.f32.mrb[0].mxu0
    %1113 = vdwg.mxu0
    %1130 = vrot.lane.b32.xlu0 %v960, 4
    %v1131 = vpop.permute.xlu0 %1130
    %1132 = vrot.lane.b32.xlu0 %v961, 4
    %v1133 = vpop.permute.xlu0 %1132
    %1134 = vrot.lane.b32.xlu0 %v962, 4
    %v1135 = vpop.permute.xlu0 %1134
    %1136 = vrot.lane.b32.xlu0 %v963, 4
    %v1137 = vpop.permute.xlu0 %1136
    %1138 = vrot.lane.b32.xlu0 %v964, 4
    %v1139 = vpop.permute.xlu0 %1138
    %1140 = vrot.lane.b32.xlu0 %v965, 4
    %v1141 = vpop.permute.xlu0 %1140
    %1142 = vrot.lane.b32.xlu0 %v966, 4
    %v1143 = vpop.permute.xlu0 %1142
    %1144 = vrot.lane.b32.xlu0 %v967, 4
    %v1145 = vpop.permute.xlu0 %1144
    %1146 = vrot.lane.b32.xlu0 %v968, 4
    %v1147 = vpop.permute.xlu0 %1146
    %1148 = vrot.lane.b32.xlu0 %v969, 4
    %v1149 = vpop.permute.xlu0 %1148
    %1150 = vrot.lane.b32.xlu0 %v970, 4
    %v1151 = vpop.permute.xlu0 %1150
    %1152 = vrot.lane.b32.xlu0 %v971, 4
    %v1153 = vpop.permute.xlu0 %1152
    %1154 = vrot.lane.b32.xlu0 %v972, 4
    %v1155 = vpop.permute.xlu0 %1154
    %1156 = vrot.lane.b32.xlu0 %v973, 4
    %v1157 = vpop.permute.xlu0 %1156
    %1158 = vrot.lane.b32.xlu0 %v974, 4
    %v1159 = vpop.permute.xlu0 %1158
    %1160 = vrot.lane.b32.xlu0 %v975, 4
    %v1161 = vpop.permute.xlu0 %1160
    %v1178 = vsel %vm468, %v1052, %v1131
    %v1179 = vsel %vm468, %v1055, %v1133
    %v1180 = vsel %vm468, %v1060, %v1135
    %v1181 = vsel %vm468, %v1063, %v1137
    %v1182 = vsel %vm468, %v1068, %v1139
    %v1183 = vsel %vm468, %v1071, %v1141
    %v1184 = vsel %vm468, %v1076, %v1143
    %v1185 = vsel %vm468, %v1079, %v1145
    %v1186 = vsel %vm468, %v1084, %v1147
    %v1187 = vsel %vm468, %v1087, %v1149
    %v1188 = vsel %vm468, %v1092, %v1151
    %v1189 = vsel %vm468, %v1095, %v1153
    %v1190 = vsel %vm468, %v1100, %v1155
    %v1191 = vsel %vm468, %v1103, %v1157
    %v1192 = vsel %vm468, %v1108, %v1159
    %v1193 = vsel %vm468, %v1111, %v1161
    %vm1194 = vcmask 48128
    %v1195 = vsel %vm1194, %v1178, 0.0
    %v1196 = vsel %vm1194, %v1179, 0.0
    %v1197 = vsel %vm1194, %v1180, 0.0
    %v1198 = vsel %vm1194, %v1181, 0.0
    %v1199 = vsel %vm1194, %v1182, 0.0
    %v1200 = vsel %vm1194, %v1183, 0.0
    %v1201 = vsel %vm1194, %v1184, 0.0
    %v1202 = vsel %vm1194, %v1185, 0.0
    %v1203 = vsel %vm1194, %v1186, 0.0
    %v1204 = vsel %vm1194, %v1187, 0.0
    %v1205 = vsel %vm1194, %v1188, 0.0
    %v1206 = vsel %vm1194, %v1189, 0.0
    %v1207 = vsel %vm1194, %v1190, 0.0
    %v1208 = vsel %vm1194, %v1191, 0.0
    %v1209 = vsel %vm1194, %v1192, 0.0
    %v1210 = vsel %vm1194, %v1193, 0.0
    %1211 = vst [vmem:[#allocation7] sm:$0xff] %v1195
    %1212 = vst [vmem:[#allocation7 + $0x8] sm:$0xff] %v1196
    %1213 = vst [vmem:[#allocation7 + $0x10] sm:$0xff] %v1197
    %1214 = vst [vmem:[#allocation7 + $0x18] sm:$0xff] %v1198
    %1215 = vst [vmem:[#allocation7 + $0x20] sm:$0xff] %v1199
    %1216 = vst [vmem:[#allocation7 + $0x28] sm:$0xff] %v1200
    %1217 = vst [vmem:[#allocation7 + $0x30] sm:$0xff] %v1201
    %1218 = vst [vmem:[#allocation7 + $0x38] sm:$0xff] %v1202
    %1219 = vst [vmem:[#allocation7 + $0x40] sm:$0xff] %v1203
    %1220 = vst [vmem:[#allocation7 + $0x48] sm:$0xff] %v1204
    %1221 = vst [vmem:[#allocation7 + $0x50] sm:$0xff] %v1205
    %1222 = vst [vmem:[#allocation7 + $0x58] sm:$0xff] %v1206
    %1223 = vst [vmem:[#allocation7 + $0x60] sm:$0xff] %v1207
    %1224 = vst [vmem:[#allocation7 + $0x68] sm:$0xff] %v1208
    %1225 = vst [vmem:[#allocation7 + $0x70] sm:$0xff] %v1209
    %1226 = vst [vmem:[#allocation7 + $0x78] sm:$0xff] %v1210
    // Predicated region
    $region18: #{tpu_custom_call.1} parent=1 // pred_check
      _
    $region19: #{tpu_custom_call.1} parent=1 // pred_check_branch
      %1228 = sbr.rel (0) target = $region21
    $region20: #{tpu_custom_call.1} parent=1 // pred_region
      %s1230 = ssub.s32 2048, 2048
      %1231 = vsyncadd [#allocation4], %s1230
      %s1232 = sshll.u32 [#allocation7], 4
      %s1233 = int_to_ptr.vmem [resolvable:$true] %s1232
      %1238 = dma.vmem_to_hbm [thread:$0]  %s1233, 2048, %s2, [#allocation4], 128, 128, 8
    $region21: #{tpu_custom_call.1} parent=1 // pred_fallthru
      _
    // Predicated region
    $region22: #{tpu_custom_call.1} parent=1 // pred_check
      _
    $region23: #{tpu_custom_call.1} parent=1 // pred_check_branch
      %1240 = sbr.rel (0) target = $region25
    $region24: #{tpu_custom_call.1} parent=1 // pred_region
      %1241 = dma.done [#allocation4], 2048
    $region25: #{tpu_custom_call.1} parent=1 // pred_fallthru
      _
    %1242 = vsyncpa [#allocation3], 1
    %1243 = vsyncpa [#allocation6], 1
    %1244 = vsyncpa [#allocation4], 1

</llo_original>
